<compile_context>
chip_gen: v7x
topology: tpu7x:2x2x1
jax: 0.10.0
libtpu: 0.0.40
codegen_flags: <defaults>
</compile_context>

<pallas_src>
import jax
import jax.numpy as jnp
from jax import lax
from jax.experimental import pallas as pl
from jax.experimental.pallas import tpu as pltpu

# ----------------------------- problem sizes --------------------------------
N = 2          # batch
C_IN = 4       # image channels
H = W = 16     # spatial
HW = H * W     # 256
FEAT = 128     # backbone feature dim (== cnn_model's last fc "in_features")
EMBED = 128    # model_param['embedding_dim']
BN_EPS = 1e-5  # nn.BatchNorm1d default

# lhs-transposed matmul dimension numbers: contract dim 0 of both operands.
_TN_DIMS = (((0,), (0,)), ((), ()))


# ------------------------------ Pallas kernel --------------------------------
def encoder_cnn_kernel(x_ref, cw_ref, lw_ref, p_ref, o_ref):
    """Whole EncoderCNN forward for one (small) batch, fully resident in VMEM.

    x_ref : (N, C_IN+1, HW)  images flattened so HW rides the lane axis;
                             last channel row is all-ones (bias fold)
    cw_ref: (C_IN+1, FEAT)   backbone pointwise-conv weight with conv_b as last row
    lw_ref: (FEAT, EMBED)    self.linear weight (in x out)
    p_ref : (3, EMBED)       coalesced params, rows = [lin_b, bn_gamma, bn_beta]
    o_ref : (N, EMBED)       output features
    """
    n_img = o_ref.shape[0]
    hw = x_ref.shape[2]

    # Hoisted loads (tiny; avoid re-loading inside the unrolled loop).
    cw = cw_ref[...]                 # (C_IN+1, FEAT)
    p = p_ref[...]                   # (3, EMBED)
    lin_b = p[0:1, :]
    gamma = p[1:2, :]
    beta = p[2:3, :]

    # ---- backbone: pointwise conv (bias folded) + ReLU + global average pool
    # One lhs-transposed MXU matmul per image (K = C_IN+1 = 5, M = HW = 256);
    # static trip count of 2 -> fully unrolled; per-image intermediate is
    # (HW, FEAT) f32 = 32 vregs, only (1, FEAT) accumulators survive.
    accs = []
    for n in range(n_img):
        xn = x_ref[n]                                                      # (C_IN+1, HW) leading-axis index
        y = lax.dot_general(xn, cw, _TN_DIMS,
                            preferred_element_type=jnp.float32)            # (HW, FEAT)
        y = jnp.maximum(y, 0.0)                                            # ReLU (bias already folded)
        accs.append(jnp.sum(y, axis=0, keepdims=True))                     # GAP sum (XLU reduce)
    feats = jnp.concatenate(accs, axis=0) * (1.0 / hw)                     # (N, FEAT)
    # (features.reshape(N, -1) is the identity: GAP output is (N, FEAT, 1, 1))

    # ---- self.linear  (M = N is tiny; MXU latency only, negligible at this size)
    lin = jnp.dot(feats, lw_ref[...], preferred_element_type=jnp.float32) + lin_b

    # ---- self.bn = BatchNorm1d(EMBED), training mode: batch stats, biased variance
    mu = jnp.mean(lin, axis=0, keepdims=True)                              # (1, EMBED)
    diff = lin - mu
    var = jnp.mean(diff * diff, axis=0, keepdims=True)                     # biased var
    bn_scale = gamma * lax.rsqrt(var + BN_EPS)                             # rsqrt -> EUP
    o_ref[...] = diff * bn_scale + beta                                    # single FMA epilogue


# ------------------------------ param packing (one-time) ---------------------
def prepare_encoder_params(conv_w, conv_b, lin_w, lin_b, gamma, beta):
    """Done ONCE when weights are set — not in the per-call hot path.

    Accepts PyTorch-style 1-D bias/affine vectors or (1, D) rows.
    Returns (cw_aug, lin_w, params) ready for `encoder_cnn_forward`.
    """
    conv_b = jnp.asarray(conv_b, jnp.float32).reshape(1, -1)
    lin_b = jnp.asarray(lin_b, jnp.float32).reshape(1, -1)
    gamma = jnp.asarray(gamma, jnp.float32).reshape(1, -1)
    beta = jnp.asarray(beta, jnp.float32).reshape(1, -1)
    cw_aug = jnp.concatenate([jnp.asarray(conv_w, jnp.float32), conv_b], axis=0)  # (C_IN+1, FEAT)
    params = jnp.concatenate([lin_b, gamma, beta], axis=0)                        # (3, EMBED)
    return cw_aug, jnp.asarray(lin_w, jnp.float32), params


# ------------------------------ JAX wrapper ----------------------------------
@jax.jit
def encoder_cnn_forward(images_nchw, cw_aug, lin_w, params):
    """images_nchw: (N, C_IN, H, W) f32; cw_aug/lin_w/params from prepare_encoder_params."""
    n, c, h, w = images_nchw.shape
    hw = h * w
    # Free reshape of contiguous NCHW: (N, C_IN, HW) -- HW maps to the 128-lane axis.
    x = images_nchw.reshape(n, c, hw)
    # Append a ones "channel" so conv_b rides the matmul contraction (K: 4 -> 5).
    x_aug = jnp.concatenate([x, jnp.ones((n, 1, hw), x.dtype)], axis=1)    # (N, C_IN+1, HW)

    feat = cw_aug.shape[1]
    embed = lin_w.shape[1]
    cost = pl.CostEstimate(
        flops=2 * n * hw * (c + 1) * feat + 2 * n * feat * embed,
        transcendentals=embed,                       # rsqrt over the BN channels
        bytes_accessed=4 * (x_aug.size + cw_aug.size + lin_w.size
                            + params.size + n * embed),
    )

    vmem = pl.BlockSpec(memory_space=pltpu.MemorySpace.VMEM)
    return pl.pallas_call(
        encoder_cnn_kernel,
        out_shape=jax.ShapeDtypeStruct((n, embed), jnp.float32),
        in_specs=[vmem, vmem, vmem, vmem],   # whole (small) arrays as single VMEM blocks
        out_specs=vmem,
        cost_estimate=cost,
    )(x_aug, cw_aug, lin_w, params)


# ------------------------------ reference (pure JAX) --------------------------
def encoder_cnn_reference(images_nchw, conv_w, conv_b, lin_w, lin_b, gamma, beta):
    n, c, h, w = images_nchw.shape
    x = images_nchw.reshape(n, c, h * w)
    y = jnp.maximum(jnp.einsum("ncs,cf->nsf", x, conv_w) + conv_b.reshape(1, 1, -1), 0.0)
    feats = jnp.mean(y, axis=1)
    lin = feats @ lin_w + lin_b.reshape(1, -1)
    mu = jnp.mean(lin, axis=0, keepdims=True)
    var = jnp.mean((lin - mu) ** 2, axis=0, keepdims=True)
    return (lin - mu) * jax.lax.rsqrt(var + BN_EPS) * gamma.reshape(1, -1) + beta.reshape(1, -1)


# ---------------------------------- main --------------------------------------
if __name__ == "__main__":
    key = jax.random.PRNGKey(0)
    k_img, k_cw, k_cb, k_lw, k_lb, k_g, k_b = jax.random.split(key, 7)

    images = jax.random.normal(k_img, (N, C_IN, H, W), dtype=jnp.float32)

    # Deterministic synthetic parameters; biases / BN affine are PyTorch-style 1-D.
    conv_w = jax.random.normal(k_cw, (C_IN, FEAT), dtype=jnp.float32) * 0.1
    conv_b = jax.random.normal(k_cb, (FEAT,), dtype=jnp.float32) * 0.1
    lin_w = jax.random.normal(k_lw, (FEAT, EMBED), dtype=jnp.float32) * 0.05
    lin_b = jax.random.normal(k_lb, (EMBED,), dtype=jnp.float32) * 0.05
    gamma = 1.0 + 0.1 * jax.random.normal(k_g, (EMBED,), dtype=jnp.float32)
    beta = 0.1 * jax.random.normal(k_b, (EMBED,), dtype=jnp.float32)

    # One-time param packing (hoisted out of the per-call path).
    cw_aug, lw, packed = prepare_encoder_params(conv_w, conv_b, lin_w, lin_b, gamma, beta)

    out = encoder_cnn_forward(images, cw_aug, lw, packed)
    out = jax.block_until_ready(out)

    ref = encoder_cnn_reference(images, conv_w, conv_b, lin_w, lin_b, gamma, beta)
    assert out.shape == (N, EMBED)
    assert jnp.allclose(out, ref, atol=1e-4, rtol=1e-4), "Pallas output mismatch vs reference"

    print("KERNEL_OK")
</pallas_src>

<mosaic_0001>
module attributes {stable_mosaic.version = 11 : i64} {
  func.func @encoder_cnn_kernel(%arg0: memref<2x5x256xf32, #tpu.memory_space<vmem>>, %arg1: memref<5x128xf32, #tpu.memory_space<vmem>>, %arg2: memref<128x128xf32, #tpu.memory_space<vmem>>, %arg3: memref<3x128xf32, #tpu.memory_space<vmem>>, %arg4: memref<2x128xf32, #tpu.memory_space<vmem>>) attributes {dimension_semantics = [], scalar_prefetch = 0 : i64, scratch_operands = 0 : i64, tpu.core_type = #tpu.core_type<tc>} {
    %c0 = arith.constant 0 : index
    %c0_0 = arith.constant 0 : index
    %0 = vector.load %arg1[%c0, %c0_0] : memref<5x128xf32, #tpu.memory_space<vmem>>, vector<5x128xf32>
    %c0_1 = arith.constant 0 : index
    %c0_2 = arith.constant 0 : index
    %1 = vector.load %arg3[%c0_1, %c0_2] : memref<3x128xf32, #tpu.memory_space<vmem>>, vector<3x128xf32>
    %2 = vector.extract_strided_slice %1 {offsets = [0, 0], sizes = [1, 128], strides = [1, 1]} : vector<3x128xf32> to vector<1x128xf32>
    %3 = vector.extract_strided_slice %1 {offsets = [1, 0], sizes = [1, 128], strides = [1, 1]} : vector<3x128xf32> to vector<1x128xf32>
    %4 = vector.extract_strided_slice %1 {offsets = [2, 0], sizes = [1, 128], strides = [1, 1]} : vector<3x128xf32> to vector<1x128xf32>
    %c0_3 = arith.constant 0 : index
    %c0_4 = arith.constant 0 : index
    %c0_5 = arith.constant 0 : index
    %5 = vector.load %arg0[%c0_3, %c0_4, %c0_5] : memref<2x5x256xf32, #tpu.memory_space<vmem>>, vector<1x5x256xf32>
    %6 = vector.shape_cast %5 : vector<1x5x256xf32> to vector<5x256xf32>
    %cst = arith.constant dense<0.000000e+00> : vector<256x128xf32>
    %7 = tpu.matmul %6, %0, %cst {dimension_numbers = #tpu.dot_dimension_numbers<[0], [0], [1], [1], [0, 1, 1, 1], [], []>} : vector<5x256xf32>, vector<5x128xf32>, vector<256x128xf32> -> vector<256x128xf32>
    %cst_6 = arith.constant 0.000000e+00 : f32
    %8 = vector.broadcast %cst_6 : f32 to vector<256x128xf32>
    %9 = arith.maximumf %7, %8 : vector<256x128xf32>
    %cst_7 = arith.constant dense<0.000000e+00> : vector<128xf32>
    %10 = vector.multi_reduction <add>, %9, %cst_7 [0] : vector<256x128xf32> to vector<128xf32>
    %11 = vector.shape_cast %10 : vector<128xf32> to vector<1x128xf32>
    %c1 = arith.constant 1 : index
    %c0_8 = arith.constant 0 : index
    %c0_9 = arith.constant 0 : index
    %12 = vector.load %arg0[%c1, %c0_8, %c0_9] : memref<2x5x256xf32, #tpu.memory_space<vmem>>, vector<1x5x256xf32>
    %13 = vector.shape_cast %12 : vector<1x5x256xf32> to vector<5x256xf32>
    %cst_10 = arith.constant dense<0.000000e+00> : vector<256x128xf32>
    %14 = tpu.matmul %13, %0, %cst_10 {dimension_numbers = #tpu.dot_dimension_numbers<[0], [0], [1], [1], [0, 1, 1, 1], [], []>} : vector<5x256xf32>, vector<5x128xf32>, vector<256x128xf32> -> vector<256x128xf32>
    %cst_11 = arith.constant 0.000000e+00 : f32
    %15 = vector.broadcast %cst_11 : f32 to vector<256x128xf32>
    %16 = arith.maximumf %14, %15 : vector<256x128xf32>
    %cst_12 = arith.constant dense<0.000000e+00> : vector<128xf32>
    %17 = vector.multi_reduction <add>, %16, %cst_12 [0] : vector<256x128xf32> to vector<128xf32>
    %18 = vector.shape_cast %17 : vector<128xf32> to vector<1x128xf32>
    %19 = tpu.concatenate %11, %18 in 0 : vector<1x128xf32>, vector<1x128xf32> -> vector<2x128xf32>
    %cst_13 = arith.constant 3.906250e-03 : f32
    %20 = vector.broadcast %cst_13 : f32 to vector<2x128xf32>
    %21 = arith.mulf %19, %20 : vector<2x128xf32>
    %c0_14 = arith.constant 0 : index
    %c0_15 = arith.constant 0 : index
    %22 = vector.load %arg2[%c0_14, %c0_15] : memref<128x128xf32, #tpu.memory_space<vmem>>, vector<128x128xf32>
    %cst_16 = arith.constant dense<0.000000e+00> : vector<2x128xf32>
    %23 = tpu.matmul %21, %22, %cst_16 {dimension_numbers = #tpu.dot_dimension_numbers<[1], [0], [0], [1], [0, 0, 1, 1], [], []>} : vector<2x128xf32>, vector<128x128xf32>, vector<2x128xf32> -> vector<2x128xf32>
    %24 = vector.broadcast %2 : vector<1x128xf32> to vector<2x128xf32>
    %25 = arith.addf %23, %24 : vector<2x128xf32>
    %cst_17 = arith.constant dense<0.000000e+00> : vector<128xf32>
    %26 = vector.multi_reduction <add>, %25, %cst_17 [0] : vector<2x128xf32> to vector<128xf32>
    %27 = vector.shape_cast %26 : vector<128xf32> to vector<1x128xf32>
    %cst_18 = arith.constant 2.000000e+00 : f32
    %28 = vector.broadcast %cst_18 : f32 to vector<1x128xf32>
    %29 = arith.divf %27, %28 : vector<1x128xf32>
    %30 = vector.broadcast %29 : vector<1x128xf32> to vector<2x128xf32>
    %31 = arith.subf %25, %30 : vector<2x128xf32>
    %32 = arith.mulf %31, %31 : vector<2x128xf32>
    %cst_19 = arith.constant dense<0.000000e+00> : vector<128xf32>
    %33 = vector.multi_reduction <add>, %32, %cst_19 [0] : vector<2x128xf32> to vector<128xf32>
    %34 = vector.shape_cast %33 : vector<128xf32> to vector<1x128xf32>
    %cst_20 = arith.constant 2.000000e+00 : f32
    %35 = vector.broadcast %cst_20 : f32 to vector<1x128xf32>
    %36 = arith.divf %34, %35 : vector<1x128xf32>
    %cst_21 = arith.constant 9.99999974E-6 : f32
    %37 = vector.broadcast %cst_21 : f32 to vector<1x128xf32>
    %38 = arith.addf %36, %37 : vector<1x128xf32>
    %39 = math.rsqrt %38 : vector<1x128xf32>
    %40 = arith.mulf %3, %39 : vector<1x128xf32>
    %41 = vector.broadcast %40 : vector<1x128xf32> to vector<2x128xf32>
    %42 = arith.mulf %31, %41 : vector<2x128xf32>
    %43 = vector.broadcast %4 : vector<1x128xf32> to vector<2x128xf32>
    %44 = arith.addf %42, %43 : vector<2x128xf32>
    %c0_22 = arith.constant 0 : index
    %c0_23 = arith.constant 0 : index
    %45 = vector.load %arg4[%c0_22, %c0_23] : memref<2x128xf32, #tpu.memory_space<vmem>>, vector<2x128xf32>
    tpu.vector_store %arg4[%c0_22, %c0_23], %44 {strides = array<i32>} : memref<2x128xf32, #tpu.memory_space<vmem>>, vector<2x128xf32>,
    return
  }
}

</mosaic_0001>

<llo_original>
// kernel: encoder_cnn_forward.1
$region0: #{encoder_cnn_forward.1}
  #allocation0 [shape = 'u32[]', space=smem, size = 0x4, offset = 0x4, fixed_abs, tag = 'smem constant byte address 0x4 - core index']
  #allocation1 [shape = 'u32[144,128]{1,0:T(1,128)}', space=vmem, size = 0x12000, scoped, tag = 'internal scratch']
  %s0 = inlined_call_operand.vmem [shape: f32[2,5,256], index: 0, kind: input, shape index: {}]
  %s1 = inlined_call_operand.vmem [shape: f32[5,128], index: 1, kind: input, shape index: {}]
  %s2 = inlined_call_operand.vmem [shape: f32[128,128], index: 2, kind: input, shape index: {}]
  %s3 = inlined_call_operand.vmem [shape: f32[3,128], index: 3, kind: input, shape index: {}]
  %s4 = inlined_call_operand.hbm [shape: f32[2,128], index: 4, kind: output, shape index: {}]
  %s5 = sld [smem:[#allocation0]]
  $region26: #{encoder_cnn_forward.1} parent=0
    _
  %s7 = ssub.s32 1, %s5
  %s8 = scalar_select 0, %s7, %s5
  $region1: #{encoder_cnn_forward.1} parent=0
    #allocation2 [shape = 'u8[1024]{0}', space=vmem, size = 0x400, scoped, tag = 'output window, operand 0, single buffered']
    #allocation3 [shape = 's32[1]{0}', space=sflag, size = 0x4, scoped, tag = 'scoped memory for encoder_cnn_forward.1']
    %9 = vsyncpa [#allocation3], 0
    // Predicated region
    $region2: #{encoder_cnn_forward.1} parent=1 // pred_check
      _
    $region3: #{encoder_cnn_forward.1} parent=1 // pred_check_branch
      %11 = sbr.rel (0) target = $region5
    $region4: #{encoder_cnn_forward.1} parent=1 // pred_region
      _
    $region5: #{encoder_cnn_forward.1} parent=1 // pred_fallthru
      _
    // Predicated region
    $region6: #{encoder_cnn_forward.1} parent=1 // pred_check
      _
    $region7: #{encoder_cnn_forward.1} parent=1 // pred_check_branch
      %13 = sbr.rel (0) target = $region9
    $region8: #{encoder_cnn_forward.1} parent=1 // pred_region
      _
    $region9: #{encoder_cnn_forward.1} parent=1 // pred_fallthru
      _
    // Predicated region
    $region10: #{encoder_cnn_forward.1} parent=1 // pred_check
      _
    $region11: #{encoder_cnn_forward.1} parent=1 // pred_check_branch
      %15 = sbr.rel (0) target = $region13
    $region12: #{encoder_cnn_forward.1} parent=1 // pred_region
      _
    $region13: #{encoder_cnn_forward.1} parent=1 // pred_fallthru
      _
    // Predicated region
    $region14: #{encoder_cnn_forward.1} parent=1 // pred_check
      _
    $region15: #{encoder_cnn_forward.1} parent=1 // pred_check_branch
      %17 = sbr.rel (0) target = $region17
    $region16: #{encoder_cnn_forward.1} parent=1 // pred_region
      _
    $region17: #{encoder_cnn_forward.1} parent=1 // pred_fallthru
      _
    %v18 = vld [vmem:[%s1] sm:$0x1f]
    %v19 = vld [vmem:[%s3] sm:$0x7]
    %v20 = vld [vmem:[%s0] sm:$0x1f]
    %v21 = vld [vmem:[%s0 + $0x8] sm:$0x1f]
    %22 = vxpose.xlu0.b32.start [1/16] %v20, 128
    %23 = vxpose.xlu0.b32.cont [2/16] 0.0, 128
    %24 = vxpose.xlu0.b32.cont [3/16] 0.0, 128
    %25 = vxpose.xlu0.b32.cont [4/16] 0.0, 128
    %26 = vxpose.xlu0.b32.cont [5/16] 0.0, 128
    %27 = vxpose.xlu0.b32.cont [6/16] 0.0, 128
    %28 = vxpose.xlu0.b32.cont [7/16] 0.0, 128
    %29 = vxpose.xlu0.b32.cont [8/16] 0.0, 128
    %30 = vxpose.xlu0.b32.cont [9/16] 0.0, 128
    %31 = vxpose.xlu0.b32.cont [10/16] 0.0, 128
    %32 = vxpose.xlu0.b32.cont [11/16] 0.0, 128
    %33 = vxpose.xlu0.b32.cont [12/16] 0.0, 128
    %34 = vxpose.xlu0.b32.cont [13/16] 0.0, 128
    %35 = vxpose.xlu0.b32.cont [14/16] 0.0, 128
    %36 = vxpose.xlu0.b32.cont [15/16] 0.0, 128
    %37 = vxpose.xlu0.b32.end [16/16] 0.0, 128
    %v38 = vpop.trf.xlu0
    %v39 = vpop.trf.xlu0
    %v40 = vpop.trf.xlu0
    %v41 = vpop.trf.xlu0
    %v42 = vpop.trf.xlu0
    %v43 = vpop.trf.xlu0
    %v44 = vpop.trf.xlu0
    %v45 = vpop.trf.xlu0
    %v46 = vpop.trf.xlu0
    %v47 = vpop.trf.xlu0
    %v48 = vpop.trf.xlu0
    %v49 = vpop.trf.xlu0
    %v50 = vpop.trf.xlu0
    %v51 = vpop.trf.xlu0
    %v52 = vpop.trf.xlu0
    %v53 = vpop.trf.xlu0
    %54 = vxpose.xlu0.b32.start [1/16] %v21, 128
    %55 = vxpose.xlu0.b32.cont [2/16] 0.0, 128
    %56 = vxpose.xlu0.b32.cont [3/16] 0.0, 128
    %57 = vxpose.xlu0.b32.cont [4/16] 0.0, 128
    %58 = vxpose.xlu0.b32.cont [5/16] 0.0, 128
    %59 = vxpose.xlu0.b32.cont [6/16] 0.0, 128
    %60 = vxpose.xlu0.b32.cont [7/16] 0.0, 128
    %61 = vxpose.xlu0.b32.cont [8/16] 0.0, 128
    %62 = vxpose.xlu0.b32.cont [9/16] 0.0, 128
    %63 = vxpose.xlu0.b32.cont [10/16] 0.0, 128
    %64 = vxpose.xlu0.b32.cont [11/16] 0.0, 128
    %65 = vxpose.xlu0.b32.cont [12/16] 0.0, 128
    %66 = vxpose.xlu0.b32.cont [13/16] 0.0, 128
    %67 = vxpose.xlu0.b32.cont [14/16] 0.0, 128
    %68 = vxpose.xlu0.b32.cont [15/16] 0.0, 128
    %69 = vxpose.xlu0.b32.end [16/16] 0.0, 128
    %v70 = vpop.trf.xlu0
    %v71 = vpop.trf.xlu0
    %v72 = vpop.trf.xlu0
    %v73 = vpop.trf.xlu0
    %v74 = vpop.trf.xlu0
    %v75 = vpop.trf.xlu0
    %v76 = vpop.trf.xlu0
    %v77 = vpop.trf.xlu0
    %v78 = vpop.trf.xlu0
    %v79 = vpop.trf.xlu0
    %v80 = vpop.trf.xlu0
    %v81 = vpop.trf.xlu0
    %v82 = vpop.trf.xlu0
    %v83 = vpop.trf.xlu0
    %v84 = vpop.trf.xlu0
    %v85 = vpop.trf.xlu0
    %vm86 = vcmask 39936
    %v88 = vsel %vm86, %v38, 0
    %v91 = vsel %vm86, %v39, 0
    %v94 = vsel %vm86, %v40, 0
    %v97 = vsel %vm86, %v41, 0
    %v100 = vsel %vm86, %v42, 0
    %v103 = vsel %vm86, %v43, 0
    %v106 = vsel %vm86, %v44, 0
    %v109 = vsel %vm86, %v45, 0
    %v112 = vsel %vm86, %v46, 0
    %v115 = vsel %vm86, %v47, 0
    %v118 = vsel %vm86, %v48, 0
    %v121 = vsel %vm86, %v49, 0
    %v124 = vsel %vm86, %v50, 0
    %v127 = vsel %vm86, %v51, 0
    %v130 = vsel %vm86, %v52, 0
    %v133 = vsel %vm86, %v53, 0
    %v136 = vsel %vm86, %v70, 0
    %v139 = vsel %vm86, %v71, 0
    %v142 = vsel %vm86, %v72, 0
    %v145 = vsel %vm86, %v73, 0
    %v148 = vsel %vm86, %v74, 0
    %v151 = vsel %vm86, %v75, 0
    %v154 = vsel %vm86, %v76, 0
    %v157 = vsel %vm86, %v77, 0
    %v160 = vsel %vm86, %v78, 0
    %v163 = vsel %vm86, %v79, 0
    %v166 = vsel %vm86, %v80, 0
    %v169 = vsel %vm86, %v81, 0
    %v172 = vsel %vm86, %v82, 0
    %v175 = vsel %vm86, %v83, 0
    %v178 = vsel %vm86, %v84, 0
    %v181 = vsel %vm86, %v85, 0
    %vm183 = vcmask 1044480
    %v185 = vsel %vm183, %v18, 0
    %187 = vmatprep.subr.mxu0 0.0
    %188 = vmatpush1.msra.mxu0 %v185
    %189 = vmatprep.subr.mxu0 0.0
    %190 = vmatpush1.msra.mxu0 0.0
    %191 = vmatprep.subr.mxu0 0.0
    %192 = vmatpush1.msra.mxu0 0.0
    %193 = vmatprep.subr.mxu0 0.0
    %194 = vmatpush1.msra.mxu0 0.0
    %195 = vmatprep.subr.mxu0 0.0
    %196 = vmatpush1.msra.mxu0 0.0
    %197 = vmatprep.subr.mxu0 0.0
    %198 = vmatpush1.msra.mxu0 0.0
    %199 = vmatprep.subr.mxu0 0.0
    %200 = vmatpush1.msra.mxu0 0.0
    %201 = vmatprep.subr.mxu0 0.0
    %202 = vmatpush1.msra.mxu0 0.0
    %203 = vmatprep.subr.mxu0 0.0
    %204 = vmatpush1.msra.mxu0 0.0
    %205 = vmatprep.subr.mxu0 0.0
    %206 = vmatpush1.msra.mxu0 0.0
    %207 = vmatprep.subr.mxu0 0.0
    %208 = vmatpush1.msra.mxu0 0.0
    %209 = vmatprep.subr.mxu0 0.0
    %210 = vmatpush1.msra.mxu0 0.0
    %211 = vmatprep.subr.mxu0 0.0
    %212 = vmatpush1.msra.mxu0 0.0
    %213 = vmatprep.subr.mxu0 0.0
    %214 = vmatpush1.msra.mxu0 0.0
    %215 = vmatprep.subr.mxu0 0.0
    %216 = vmatpush1.msra.mxu0 0.0
    %217 = vmatprep.subr.mxu0 0.0
    %218 = vmatpush1.msra.mxu0 0.0
    %219 = vmatprep.subr.mxu0 0.0
    %220 = vmatpush1.msra.mxu0 0.0
    %221 = vmatprep.subr.mxu0 0.0
    %222 = vmatpush1.msra.mxu0 0.0
    %223 = vmatprep.subr.mxu0 0.0
    %224 = vmatpush1.msra.mxu0 0.0
    %225 = vmatprep.subr.mxu0 0.0
    %226 = vmatpush1.msra.mxu0 0.0
    %227 = vmatprep.subr.mxu0 0.0
    %228 = vmatpush1.msra.mxu0 0.0
    %229 = vmatprep.subr.mxu0 0.0
    %230 = vmatpush1.msra.mxu0 0.0
    %231 = vmatprep.subr.mxu0 0.0
    %232 = vmatpush1.msra.mxu0 0.0
    %233 = vmatprep.subr.mxu0 0.0
    %234 = vmatpush1.msra.mxu0 0.0
    %235 = vmatprep.subr.mxu0 0.0
    %236 = vmatpush1.msra.mxu0 0.0
    %237 = vmatprep.subr.mxu0 0.0
    %238 = vmatpush1.msra.mxu0 0.0
    %239 = vmatprep.subr.mxu0 0.0
    %240 = vmatpush1.msra.mxu0 0.0
    %241 = vmatprep.subr.mxu0 0.0
    %242 = vmatpush1.msra.mxu0 0.0
    %243 = vmatprep.subr.mxu0 0.0
    %244 = vmatpush1.msra.mxu0 0.0
    %245 = vmatprep.subr.mxu0 0.0
    %246 = vmatpush1.msra.mxu0 0.0
    %247 = vmatprep.subr.mxu0 0.0
    %248 = vmatpush1.msra.mxu0 0.0
    %249 = vmatprep.subr.mxu0 0.0
    %250 = vmatpush1.msra.mxu0 0.0
    %251 = vmatprep.mubr.f32.mxu0 0.0
    %252 = vmatmul.mubr.f32.gmra.mrb[0].mxu0 %v88
    %v253 = vpop.f32.mrb[0].mxu0
    %v254 = vadd.f32 0.0, %v253
    %v255 = vpop.f32.mrb[0].mxu0
    %256 = vmatprep.mubr.f32.mxu0 0.0
    %257 = vmatmul.mubr.f32.gmra.mrb[0].mxu0 %v91
    %v258 = vpop.f32.mrb[0].mxu0
    %v259 = vadd.f32 0.0, %v258
    %v260 = vpop.f32.mrb[0].mxu0
    %261 = vmatprep.mubr.f32.mxu0 0.0
    %262 = vmatmul.mubr.f32.gmra.mrb[0].mxu0 %v94
    %v263 = vpop.f32.mrb[0].mxu0
    %v264 = vadd.f32 0.0, %v263
    %v265 = vpop.f32.mrb[0].mxu0
    %266 = vmatprep.mubr.f32.mxu0 0.0
    %267 = vmatmul.mubr.f32.gmra.mrb[0].mxu0 %v97
    %v268 = vpop.f32.mrb[0].mxu0
    %v269 = vadd.f32 0.0, %v268
    %v270 = vpop.f32.mrb[0].mxu0
    %271 = vmatprep.mubr.f32.mxu0 0.0
    %272 = vmatmul.mubr.f32.gmra.mrb[0].mxu0 %v100
    %v273 = vpop.f32.mrb[0].mxu0
    %v274 = vadd.f32 0.0, %v273
    %v275 = vpop.f32.mrb[0].mxu0
    %276 = vmatprep.mubr.f32.mxu0 0.0
    %277 = vmatmul.mubr.f32.gmra.mrb[0].mxu0 %v103
    %v278 = vpop.f32.mrb[0].mxu0
    %v279 = vadd.f32 0.0, %v278
    %v280 = vpop.f32.mrb[0].mxu0
    %281 = vmatprep.mubr.f32.mxu0 0.0
    %282 = vmatmul.mubr.f32.gmra.mrb[0].mxu0 %v106
    %v283 = vpop.f32.mrb[0].mxu0
    %v284 = vadd.f32 0.0, %v283
    %v285 = vpop.f32.mrb[0].mxu0
    %286 = vmatprep.mubr.f32.mxu0 0.0
    %287 = vmatmul.mubr.f32.gmra.mrb[0].mxu0 %v109
    %v288 = vpop.f32.mrb[0].mxu0
    %v289 = vadd.f32 0.0, %v288
    %v290 = vpop.f32.mrb[0].mxu0
    %291 = vmatprep.mubr.f32.mxu0 0.0
    %292 = vmatmul.mubr.f32.gmra.mrb[0].mxu0 %v112
    %v293 = vpop.f32.mrb[0].mxu0
    %v294 = vadd.f32 0.0, %v293
    %v295 = vpop.f32.mrb[0].mxu0
    %296 = vmatprep.mubr.f32.mxu0 0.0
    %297 = vmatmul.mubr.f32.gmra.mrb[0].mxu0 %v115
    %v298 = vpop.f32.mrb[0].mxu0
    %v299 = vadd.f32 0.0, %v298
    %v300 = vpop.f32.mrb[0].mxu0
    %301 = vmatprep.mubr.f32.mxu0 0.0
    %302 = vmatmul.mubr.f32.gmra.mrb[0].mxu0 %v118
    %v303 = vpop.f32.mrb[0].mxu0
    %v304 = vadd.f32 0.0, %v303
    %v305 = vpop.f32.mrb[0].mxu0
    %306 = vmatprep.mubr.f32.mxu0 0.0
    %307 = vmatmul.mubr.f32.gmra.mrb[0].mxu0 %v121
    %v308 = vpop.f32.mrb[0].mxu0
    %v309 = vadd.f32 0.0, %v308
    %v310 = vpop.f32.mrb[0].mxu0
    %311 = vmatprep.mubr.f32.mxu0 0.0
    %312 = vmatmul.mubr.f32.gmra.mrb[0].mxu0 %v124
    %v313 = vpop.f32.mrb[0].mxu0
    %v314 = vadd.f32 0.0, %v313
    %v315 = vpop.f32.mrb[0].mxu0
    %316 = vmatprep.mubr.f32.mxu0 0.0
    %317 = vmatmul.mubr.f32.gmra.mrb[0].mxu0 %v127
    %v318 = vpop.f32.mrb[0].mxu0
    %v319 = vadd.f32 0.0, %v318
    %v320 = vpop.f32.mrb[0].mxu0
    %321 = vmatprep.mubr.f32.mxu0 0.0
    %322 = vmatmul.mubr.f32.gmra.mrb[0].mxu0 %v130
    %v323 = vpop.f32.mrb[0].mxu0
    %v324 = vadd.f32 0.0, %v323
    %v325 = vpop.f32.mrb[0].mxu0
    %326 = vmatprep.mubr.f32.mxu0 0.0
    %327 = vmatmul.mubr.f32.gmra.mrb[0].mxu0 %v133
    %v328 = vpop.f32.mrb[0].mxu0
    %v329 = vadd.f32 0.0, %v328
    %v330 = vpop.f32.mrb[0].mxu0
    %331 = vmatprep.mubr.f32.mxu0 0.0
    %332 = vmatmul.mubr.f32.gmra.mrb[0].mxu0 %v136
    %v333 = vpop.f32.mrb[0].mxu0
    %v334 = vadd.f32 0.0, %v333
    %v335 = vpop.f32.mrb[0].mxu0
    %336 = vmatprep.mubr.f32.mxu0 0.0
    %337 = vmatmul.mubr.f32.gmra.mrb[0].mxu0 %v139
    %v338 = vpop.f32.mrb[0].mxu0
    %v339 = vadd.f32 0.0, %v338
    %v340 = vpop.f32.mrb[0].mxu0
    %341 = vmatprep.mubr.f32.mxu0 0.0
    %342 = vmatmul.mubr.f32.gmra.mrb[0].mxu0 %v142
    %v343 = vpop.f32.mrb[0].mxu0
    %v344 = vadd.f32 0.0, %v343
    %v345 = vpop.f32.mrb[0].mxu0
    %346 = vmatprep.mubr.f32.mxu0 0.0
    %347 = vmatmul.mubr.f32.gmra.mrb[0].mxu0 %v145
    %v348 = vpop.f32.mrb[0].mxu0
    %v349 = vadd.f32 0.0, %v348
    %v350 = vpop.f32.mrb[0].mxu0
    %351 = vmatprep.mubr.f32.mxu0 0.0
    %352 = vmatmul.mubr.f32.gmra.mrb[0].mxu0 %v148
    %v353 = vpop.f32.mrb[0].mxu0
    %v354 = vadd.f32 0.0, %v353
    %v355 = vpop.f32.mrb[0].mxu0
    %356 = vmatprep.mubr.f32.mxu0 0.0
    %357 = vmatmul.mubr.f32.gmra.mrb[0].mxu0 %v151
    %v358 = vpop.f32.mrb[0].mxu0
    %v359 = vadd.f32 0.0, %v358
    %v360 = vpop.f32.mrb[0].mxu0
    %361 = vmatprep.mubr.f32.mxu0 0.0
    %362 = vmatmul.mubr.f32.gmra.mrb[0].mxu0 %v154
    %v363 = vpop.f32.mrb[0].mxu0
    %v364 = vadd.f32 0.0, %v363
    %v365 = vpop.f32.mrb[0].mxu0
    %366 = vmatprep.mubr.f32.mxu0 0.0
    %367 = vmatmul.mubr.f32.gmra.mrb[0].mxu0 %v157
    %v368 = vpop.f32.mrb[0].mxu0
    %v369 = vadd.f32 0.0, %v368
    %v370 = vpop.f32.mrb[0].mxu0
    %371 = vmatprep.mubr.f32.mxu0 0.0
    %372 = vmatmul.mubr.f32.gmra.mrb[0].mxu0 %v160
    %v373 = vpop.f32.mrb[0].mxu0
    %v374 = vadd.f32 0.0, %v373
    %v375 = vpop.f32.mrb[0].mxu0
    %376 = vmatprep.mubr.f32.mxu0 0.0
    %377 = vmatmul.mubr.f32.gmra.mrb[0].mxu0 %v163
    %v378 = vpop.f32.mrb[0].mxu0
    %v379 = vadd.f32 0.0, %v378
    %v380 = vpop.f32.mrb[0].mxu0
    %381 = vmatprep.mubr.f32.mxu0 0.0
    %382 = vmatmul.mubr.f32.gmra.mrb[0].mxu0 %v166
    %v383 = vpop.f32.mrb[0].mxu0
    %v384 = vadd.f32 0.0, %v383
    %v385 = vpop.f32.mrb[0].mxu0
    %386 = vmatprep.mubr.f32.mxu0 0.0
    %387 = vmatmul.mubr.f32.gmra.mrb[0].mxu0 %v169
    %v388 = vpop.f32.mrb[0].mxu0
    %v389 = vadd.f32 0.0, %v388
    %v390 = vpop.f32.mrb[0].mxu0
    %391 = vmatprep.mubr.f32.mxu0 0.0
    %392 = vmatmul.mubr.f32.gmra.mrb[0].mxu0 %v172
    %v393 = vpop.f32.mrb[0].mxu0
    %v394 = vadd.f32 0.0, %v393
    %v395 = vpop.f32.mrb[0].mxu0
    %396 = vmatprep.mubr.f32.mxu0 0.0
    %397 = vmatmul.mubr.f32.gmra.mrb[0].mxu0 %v175
    %v398 = vpop.f32.mrb[0].mxu0
    %v399 = vadd.f32 0.0, %v398
    %v400 = vpop.f32.mrb[0].mxu0
    %401 = vmatprep.mubr.f32.mxu0 0.0
    %402 = vmatmul.mubr.f32.gmra.mrb[0].mxu0 %v178
    %v403 = vpop.f32.mrb[0].mxu0
    %v404 = vadd.f32 0.0, %v403
    %v405 = vpop.f32.mrb[0].mxu0
    %406 = vmatprep.mubr.f32.mxu0 0.0
    %407 = vmatmul.mubr.f32.gmra.mrb[0].mxu0 %v181
    %v408 = vpop.f32.mrb[0].mxu0
    %v409 = vadd.f32 0.0, %v408
    %v410 = vpop.f32.mrb[0].mxu0
    %411 = vdwg.mxu0
    %v412 = vmax.f32 %v254, 0.0
    %v413 = vmax.f32 %v259, 0.0
    %v414 = vmax.f32 %v264, 0.0
    %v415 = vmax.f32 %v269, 0.0
    %v416 = vmax.f32 %v274, 0.0
    %v417 = vmax.f32 %v279, 0.0
    %v418 = vmax.f32 %v284, 0.0
    %v419 = vmax.f32 %v289, 0.0
    %v420 = vmax.f32 %v294, 0.0
    %v421 = vmax.f32 %v299, 0.0
    %v422 = vmax.f32 %v304, 0.0
    %v423 = vmax.f32 %v309, 0.0
    %v424 = vmax.f32 %v314, 0.0
    %v425 = vmax.f32 %v319, 0.0
    %v426 = vmax.f32 %v324, 0.0
    %v427 = vmax.f32 %v329, 0.0
    %v428 = vmax.f32 %v334, 0.0
    %v429 = vmax.f32 %v339, 0.0
    %v430 = vmax.f32 %v344, 0.0
    %v431 = vmax.f32 %v349, 0.0
    %v432 = vmax.f32 %v354, 0.0
    %v433 = vmax.f32 %v359, 0.0
    %v434 = vmax.f32 %v364, 0.0
    %v435 = vmax.f32 %v369, 0.0
    %v436 = vmax.f32 %v374, 0.0
    %v437 = vmax.f32 %v379, 0.0
    %v438 = vmax.f32 %v384, 0.0
    %v439 = vmax.f32 %v389, 0.0
    %v440 = vmax.f32 %v394, 0.0
    %v441 = vmax.f32 %v399, 0.0
    %v442 = vmax.f32 %v404, 0.0
    %v443 = vmax.f32 %v409, 0.0
    %v444 = vadd.f32 %v412, %v413
    %v445 = vadd.f32 %v444, %v414
    %v446 = vadd.f32 %v445, %v415
    %v447 = vadd.f32 %v446, %v416
    %v448 = vadd.f32 %v447, %v417
    %v449 = vadd.f32 %v448, %v418
    %v450 = vadd.f32 %v449, %v419
    %v451 = vadd.f32 %v450, %v420
    %v452 = vadd.f32 %v451, %v421
    %v453 = vadd.f32 %v452, %v422
    %v454 = vadd.f32 %v453, %v423
    %v455 = vadd.f32 %v454, %v424
    %v456 = vadd.f32 %v455, %v425
    %v457 = vadd.f32 %v456, %v426
    %v458 = vadd.f32 %v457, %v427
    %v459 = vadd.f32 %v458, %v428
    %v460 = vadd.f32 %v459, %v429
    %v461 = vadd.f32 %v460, %v430
    %v462 = vadd.f32 %v461, %v431
    %v463 = vadd.f32 %v462, %v432
    %v464 = vadd.f32 %v463, %v433
    %v465 = vadd.f32 %v464, %v434
    %v466 = vadd.f32 %v465, %v435
    %v467 = vadd.f32 %v466, %v436
    %v468 = vadd.f32 %v467, %v437
    %v469 = vadd.f32 %v468, %v438
    %v470 = vadd.f32 %v469, %v439
    %v471 = vadd.f32 %v470, %v440
    %v472 = vadd.f32 %v471, %v441
    %v473 = vadd.f32 %v472, %v442
    %v474 = vadd.f32 %v473, %v443
    %v475 = vrot.slane %v474, 4
    %v476 = vadd.f32 %v474, %v475
    %v477 = vrot.slane %v476, 2
    %v478 = vadd.f32 %v476, %v477
    %v479 = vrot.slane %v478, 1
    %v480 = vadd.f32 %v478, %v479
    %s481 = scalar_lea.vmem %s0, 16
    %v482 = vld [vmem:[%s481] sm:$0x1f]
    %v483 = vld [vmem:[%s481 + $0x8] sm:$0x1f]
    %484 = vxpose.xlu0.b32.start [1/16] %v482, 128
    %485 = vxpose.xlu0.b32.cont [2/16] 0.0, 128
    %486 = vxpose.xlu0.b32.cont [3/16] 0.0, 128
    %487 = vxpose.xlu0.b32.cont [4/16] 0.0, 128
    %488 = vxpose.xlu0.b32.cont [5/16] 0.0, 128
    %489 = vxpose.xlu0.b32.cont [6/16] 0.0, 128
    %490 = vxpose.xlu0.b32.cont [7/16] 0.0, 128
    %491 = vxpose.xlu0.b32.cont [8/16] 0.0, 128
    %492 = vxpose.xlu0.b32.cont [9/16] 0.0, 128
    %493 = vxpose.xlu0.b32.cont [10/16] 0.0, 128
    %494 = vxpose.xlu0.b32.cont [11/16] 0.0, 128
    %495 = vxpose.xlu0.b32.cont [12/16] 0.0, 128
    %496 = vxpose.xlu0.b32.cont [13/16] 0.0, 128
    %497 = vxpose.xlu0.b32.cont [14/16] 0.0, 128
    %498 = vxpose.xlu0.b32.cont [15/16] 0.0, 128
    %499 = vxpose.xlu0.b32.end [16/16] 0.0, 128
    %v500 = vpop.trf.xlu0
    %v501 = vpop.trf.xlu0
    %v502 = vpop.trf.xlu0
    %v503 = vpop.trf.xlu0
    %v504 = vpop.trf.xlu0
    %v505 = vpop.trf.xlu0
    %v506 = vpop.trf.xlu0
    %v507 = vpop.trf.xlu0
    %v508 = vpop.trf.xlu0
    %v509 = vpop.trf.xlu0
    %v510 = vpop.trf.xlu0
    %v511 = vpop.trf.xlu0
    %v512 = vpop.trf.xlu0
    %v513 = vpop.trf.xlu0
    %v514 = vpop.trf.xlu0
    %v515 = vpop.trf.xlu0
    %516 = vxpose.xlu0.b32.start [1/16] %v483, 128
    %517 = vxpose.xlu0.b32.cont [2/16] 0.0, 128
    %518 = vxpose.xlu0.b32.cont [3/16] 0.0, 128
    %519 = vxpose.xlu0.b32.cont [4/16] 0.0, 128
    %520 = vxpose.xlu0.b32.cont [5/16] 0.0, 128
    %521 = vxpose.xlu0.b32.cont [6/16] 0.0, 128
    %522 = vxpose.xlu0.b32.cont [7/16] 0.0, 128
    %523 = vxpose.xlu0.b32.cont [8/16] 0.0, 128
    %524 = vxpose.xlu0.b32.cont [9/16] 0.0, 128
    %525 = vxpose.xlu0.b32.cont [10/16] 0.0, 128
    %526 = vxpose.xlu0.b32.cont [11/16] 0.0, 128
    %527 = vxpose.xlu0.b32.cont [12/16] 0.0, 128
    %528 = vxpose.xlu0.b32.cont [13/16] 0.0, 128
    %529 = vxpose.xlu0.b32.cont [14/16] 0.0, 128
    %530 = vxpose.xlu0.b32.cont [15/16] 0.0, 128
    %531 = vxpose.xlu0.b32.end [16/16] 0.0, 128
    %v532 = vpop.trf.xlu0
    %v533 = vpop.trf.xlu0
    %v534 = vpop.trf.xlu0
    %v535 = vpop.trf.xlu0
    %v536 = vpop.trf.xlu0
    %v537 = vpop.trf.xlu0
    %v538 = vpop.trf.xlu0
    %v539 = vpop.trf.xlu0
    %v540 = vpop.trf.xlu0
    %v541 = vpop.trf.xlu0
    %v542 = vpop.trf.xlu0
    %v543 = vpop.trf.xlu0
    %v544 = vpop.trf.xlu0
    %v545 = vpop.trf.xlu0
    %v546 = vpop.trf.xlu0
    %v547 = vpop.trf.xlu0
    %v549 = vsel %vm86, %v500, 0
    %v552 = vsel %vm86, %v501, 0
    %v555 = vsel %vm86, %v502, 0
    %v558 = vsel %vm86, %v503, 0
    %v561 = vsel %vm86, %v504, 0
    %v564 = vsel %vm86, %v505, 0
    %v567 = vsel %vm86, %v506, 0
    %v570 = vsel %vm86, %v507, 0
    %v573 = vsel %vm86, %v508, 0
    %v576 = vsel %vm86, %v509, 0
    %v579 = vsel %vm86, %v510, 0
    %v582 = vsel %vm86, %v511, 0
    %v585 = vsel %vm86, %v512, 0
    %v588 = vsel %vm86, %v513, 0
    %v591 = vsel %vm86, %v514, 0
    %v594 = vsel %vm86, %v515, 0
    %v597 = vsel %vm86, %v532, 0
    %v600 = vsel %vm86, %v533, 0
    %v603 = vsel %vm86, %v534, 0
    %v606 = vsel %vm86, %v535, 0
    %v609 = vsel %vm86, %v536, 0
    %v612 = vsel %vm86, %v537, 0
    %v615 = vsel %vm86, %v538, 0
    %v618 = vsel %vm86, %v539, 0
    %v621 = vsel %vm86, %v540, 0
    %v624 = vsel %vm86, %v541, 0
    %v627 = vsel %vm86, %v542, 0
    %v630 = vsel %vm86, %v543, 0
    %v633 = vsel %vm86, %v544, 0
    %v636 = vsel %vm86, %v545, 0
    %v639 = vsel %vm86, %v546, 0
    %v642 = vsel %vm86, %v547, 0
    %644 = vmatprep.subr.mxu0 0.0
    %645 = vmatpush1.msra.mxu0 %v185
    %646 = vmatprep.subr.mxu0 0.0
    %647 = vmatpush1.msra.mxu0 0.0
    %648 = vmatprep.subr.mxu0 0.0
    %649 = vmatpush1.msra.mxu0 0.0
    %650 = vmatprep.subr.mxu0 0.0
    %651 = vmatpush1.msra.mxu0 0.0
    %652 = vmatprep.subr.mxu0 0.0
    %653 = vmatpush1.msra.mxu0 0.0
    %654 = vmatprep.subr.mxu0 0.0
    %655 = vmatpush1.msra.mxu0 0.0
    %656 = vmatprep.subr.mxu0 0.0
    %657 = vmatpush1.msra.mxu0 0.0
    %658 = vmatprep.subr.mxu0 0.0
    %659 = vmatpush1.msra.mxu0 0.0
    %660 = vmatprep.subr.mxu0 0.0
    %661 = vmatpush1.msra.mxu0 0.0
    %662 = vmatprep.subr.mxu0 0.0
    %663 = vmatpush1.msra.mxu0 0.0
    %664 = vmatprep.subr.mxu0 0.0
    %665 = vmatpush1.msra.mxu0 0.0
    %666 = vmatprep.subr.mxu0 0.0
    %667 = vmatpush1.msra.mxu0 0.0
    %668 = vmatprep.subr.mxu0 0.0
    %669 = vmatpush1.msra.mxu0 0.0
    %670 = vmatprep.subr.mxu0 0.0
    %671 = vmatpush1.msra.mxu0 0.0
    %672 = vmatprep.subr.mxu0 0.0
    %673 = vmatpush1.msra.mxu0 0.0
    %674 = vmatprep.subr.mxu0 0.0
    %675 = vmatpush1.msra.mxu0 0.0
    %676 = vmatprep.subr.mxu0 0.0
    %677 = vmatpush1.msra.mxu0 0.0
    %678 = vmatprep.subr.mxu0 0.0
    %679 = vmatpush1.msra.mxu0 0.0
    %680 = vmatprep.subr.mxu0 0.0
    %681 = vmatpush1.msra.mxu0 0.0
    %682 = vmatprep.subr.mxu0 0.0
    %683 = vmatpush1.msra.mxu0 0.0
    %684 = vmatprep.subr.mxu0 0.0
    %685 = vmatpush1.msra.mxu0 0.0
    %686 = vmatprep.subr.mxu0 0.0
    %687 = vmatpush1.msra.mxu0 0.0
    %688 = vmatprep.subr.mxu0 0.0
    %689 = vmatpush1.msra.mxu0 0.0
    %690 = vmatprep.subr.mxu0 0.0
    %691 = vmatpush1.msra.mxu0 0.0
    %692 = vmatprep.subr.mxu0 0.0
    %693 = vmatpush1.msra.mxu0 0.0
    %694 = vmatprep.subr.mxu0 0.0
    %695 = vmatpush1.msra.mxu0 0.0
    %696 = vmatprep.subr.mxu0 0.0
    %697 = vmatpush1.msra.mxu0 0.0
    %698 = vmatprep.subr.mxu0 0.0
    %699 = vmatpush1.msra.mxu0 0.0
    %700 = vmatprep.subr.mxu0 0.0
    %701 = vmatpush1.msra.mxu0 0.0
    %702 = vmatprep.subr.mxu0 0.0
    %703 = vmatpush1.msra.mxu0 0.0
    %704 = vmatprep.subr.mxu0 0.0
    %705 = vmatpush1.msra.mxu0 0.0
    %706 = vmatprep.subr.mxu0 0.0
    %707 = vmatpush1.msra.mxu0 0.0
    %708 = vmatprep.mubr.f32.mxu0 0.0
    %709 = vmatmul.mubr.f32.gmra.mrb[0].mxu0 %v549
    %v710 = vpop.f32.mrb[0].mxu0
    %v711 = vadd.f32 0.0, %v710
    %v712 = vpop.f32.mrb[0].mxu0
    %713 = vmatprep.mubr.f32.mxu0 0.0
    %714 = vmatmul.mubr.f32.gmra.mrb[0].mxu0 %v552
    %v715 = vpop.f32.mrb[0].mxu0
    %v716 = vadd.f32 0.0, %v715
    %v717 = vpop.f32.mrb[0].mxu0
    %718 = vmatprep.mubr.f32.mxu0 0.0
    %719 = vmatmul.mubr.f32.gmra.mrb[0].mxu0 %v555
    %v720 = vpop.f32.mrb[0].mxu0
    %v721 = vadd.f32 0.0, %v720
    %v722 = vpop.f32.mrb[0].mxu0
    %723 = vmatprep.mubr.f32.mxu0 0.0
    %724 = vmatmul.mubr.f32.gmra.mrb[0].mxu0 %v558
    %v725 = vpop.f32.mrb[0].mxu0
    %v726 = vadd.f32 0.0, %v725
    %v727 = vpop.f32.mrb[0].mxu0
    %728 = vmatprep.mubr.f32.mxu0 0.0
    %729 = vmatmul.mubr.f32.gmra.mrb[0].mxu0 %v561
    %v730 = vpop.f32.mrb[0].mxu0
    %v731 = vadd.f32 0.0, %v730
    %v732 = vpop.f32.mrb[0].mxu0
    %733 = vmatprep.mubr.f32.mxu0 0.0
    %734 = vmatmul.mubr.f32.gmra.mrb[0].mxu0 %v564
    %v735 = vpop.f32.mrb[0].mxu0
    %v736 = vadd.f32 0.0, %v735
    %v737 = vpop.f32.mrb[0].mxu0
    %738 = vmatprep.mubr.f32.mxu0 0.0
    %739 = vmatmul.mubr.f32.gmra.mrb[0].mxu0 %v567
    %v740 = vpop.f32.mrb[0].mxu0
    %v741 = vadd.f32 0.0, %v740
    %v742 = vpop.f32.mrb[0].mxu0
    %743 = vmatprep.mubr.f32.mxu0 0.0
    %744 = vmatmul.mubr.f32.gmra.mrb[0].mxu0 %v570
    %v745 = vpop.f32.mrb[0].mxu0
    %v746 = vadd.f32 0.0, %v745
    %v747 = vpop.f32.mrb[0].mxu0
    %748 = vmatprep.mubr.f32.mxu0 0.0
    %749 = vmatmul.mubr.f32.gmra.mrb[0].mxu0 %v573
    %v750 = vpop.f32.mrb[0].mxu0
    %v751 = vadd.f32 0.0, %v750
    %v752 = vpop.f32.mrb[0].mxu0
    %753 = vmatprep.mubr.f32.mxu0 0.0
    %754 = vmatmul.mubr.f32.gmra.mrb[0].mxu0 %v576
    %v755 = vpop.f32.mrb[0].mxu0
    %v756 = vadd.f32 0.0, %v755
    %v757 = vpop.f32.mrb[0].mxu0
    %758 = vmatprep.mubr.f32.mxu0 0.0
    %759 = vmatmul.mubr.f32.gmra.mrb[0].mxu0 %v579
    %v760 = vpop.f32.mrb[0].mxu0
    %v761 = vadd.f32 0.0, %v760
    %v762 = vpop.f32.mrb[0].mxu0
    %763 = vmatprep.mubr.f32.mxu0 0.0
    %764 = vmatmul.mubr.f32.gmra.mrb[0].mxu0 %v582
    %v765 = vpop.f32.mrb[0].mxu0
    %v766 = vadd.f32 0.0, %v765
    %v767 = vpop.f32.mrb[0].mxu0
    %768 = vmatprep.mubr.f32.mxu0 0.0
    %769 = vmatmul.mubr.f32.gmra.mrb[0].mxu0 %v585
    %v770 = vpop.f32.mrb[0].mxu0
    %v771 = vadd.f32 0.0, %v770
    %v772 = vpop.f32.mrb[0].mxu0
    %773 = vmatprep.mubr.f32.mxu0 0.0
    %774 = vmatmul.mubr.f32.gmra.mrb[0].mxu0 %v588
    %v775 = vpop.f32.mrb[0].mxu0
    %v776 = vadd.f32 0.0, %v775
    %v777 = vpop.f32.mrb[0].mxu0
    %778 = vmatprep.mubr.f32.mxu0 0.0
    %779 = vmatmul.mubr.f32.gmra.mrb[0].mxu0 %v591
    %v780 = vpop.f32.mrb[0].mxu0
    %v781 = vadd.f32 0.0, %v780
    %v782 = vpop.f32.mrb[0].mxu0
    %783 = vmatprep.mubr.f32.mxu0 0.0
    %784 = vmatmul.mubr.f32.gmra.mrb[0].mxu0 %v594
    %v785 = vpop.f32.mrb[0].mxu0
    %v786 = vadd.f32 0.0, %v785
    %v787 = vpop.f32.mrb[0].mxu0
    %788 = vmatprep.mubr.f32.mxu0 0.0
    %789 = vmatmul.mubr.f32.gmra.mrb[0].mxu0 %v597
    %v790 = vpop.f32.mrb[0].mxu0
    %v791 = vadd.f32 0.0, %v790
    %v792 = vpop.f32.mrb[0].mxu0
    %793 = vmatprep.mubr.f32.mxu0 0.0
    %794 = vmatmul.mubr.f32.gmra.mrb[0].mxu0 %v600
    %v795 = vpop.f32.mrb[0].mxu0
    %v796 = vadd.f32 0.0, %v795
    %v797 = vpop.f32.mrb[0].mxu0
    %798 = vmatprep.mubr.f32.mxu0 0.0
    %799 = vmatmul.mubr.f32.gmra.mrb[0].mxu0 %v603
    %v800 = vpop.f32.mrb[0].mxu0
    %v801 = vadd.f32 0.0, %v800
    %v802 = vpop.f32.mrb[0].mxu0
    %803 = vmatprep.mubr.f32.mxu0 0.0
    %804 = vmatmul.mubr.f32.gmra.mrb[0].mxu0 %v606
    %v805 = vpop.f32.mrb[0].mxu0
    %v806 = vadd.f32 0.0, %v805
    %v807 = vpop.f32.mrb[0].mxu0
    %808 = vmatprep.mubr.f32.mxu0 0.0
    %809 = vmatmul.mubr.f32.gmra.mrb[0].mxu0 %v609
    %v810 = vpop.f32.mrb[0].mxu0
    %v811 = vadd.f32 0.0, %v810
    %v812 = vpop.f32.mrb[0].mxu0
    %813 = vmatprep.mubr.f32.mxu0 0.0
    %814 = vmatmul.mubr.f32.gmra.mrb[0].mxu0 %v612
    %v815 = vpop.f32.mrb[0].mxu0
    %v816 = vadd.f32 0.0, %v815
    %v817 = vpop.f32.mrb[0].mxu0
    %818 = vmatprep.mubr.f32.mxu0 0.0
    %819 = vmatmul.mubr.f32.gmra.mrb[0].mxu0 %v615
    %v820 = vpop.f32.mrb[0].mxu0
    %v821 = vadd.f32 0.0, %v820
    %v822 = vpop.f32.mrb[0].mxu0
    %823 = vmatprep.mubr.f32.mxu0 0.0
    %824 = vmatmul.mubr.f32.gmra.mrb[0].mxu0 %v618
    %v825 = vpop.f32.mrb[0].mxu0
    %v826 = vadd.f32 0.0, %v825
    %v827 = vpop.f32.mrb[0].mxu0
    %828 = vmatprep.mubr.f32.mxu0 0.0
    %829 = vmatmul.mubr.f32.gmra.mrb[0].mxu0 %v621
    %v830 = vpop.f32.mrb[0].mxu0
    %v831 = vadd.f32 0.0, %v830
    %v832 = vpop.f32.mrb[0].mxu0
    %833 = vmatprep.mubr.f32.mxu0 0.0
    %834 = vmatmul.mubr.f32.gmra.mrb[0].mxu0 %v624
    %v835 = vpop.f32.mrb[0].mxu0
    %v836 = vadd.f32 0.0, %v835
    %v837 = vpop.f32.mrb[0].mxu0
    %838 = vmatprep.mubr.f32.mxu0 0.0
    %839 = vmatmul.mubr.f32.gmra.mrb[0].mxu0 %v627
    %v840 = vpop.f32.mrb[0].mxu0
    %v841 = vadd.f32 0.0, %v840
    %v842 = vpop.f32.mrb[0].mxu0
    %843 = vmatprep.mubr.f32.mxu0 0.0
    %844 = vmatmul.mubr.f32.gmra.mrb[0].mxu0 %v630
    %v845 = vpop.f32.mrb[0].mxu0
    %v846 = vadd.f32 0.0, %v845
    %v847 = vpop.f32.mrb[0].mxu0
    %848 = vmatprep.mubr.f32.mxu0 0.0
    %849 = vmatmul.mubr.f32.gmra.mrb[0].mxu0 %v633
    %v850 = vpop.f32.mrb[0].mxu0
    %v851 = vadd.f32 0.0, %v850
    %v852 = vpop.f32.mrb[0].mxu0
    %853 = vmatprep.mubr.f32.mxu0 0.0
    %854 = vmatmul.mubr.f32.gmra.mrb[0].mxu0 %v636
    %v855 = vpop.f32.mrb[0].mxu0
    %v856 = vadd.f32 0.0, %v855
    %v857 = vpop.f32.mrb[0].mxu0
    %858 = vmatprep.mubr.f32.mxu0 0.0
    %859 = vmatmul.mubr.f32.gmra.mrb[0].mxu0 %v639
    %v860 = vpop.f32.mrb[0].mxu0
    %v861 = vadd.f32 0.0, %v860
    %v862 = vpop.f32.mrb[0].mxu0
    %863 = vmatprep.mubr.f32.mxu0 0.0
    %864 = vmatmul.mubr.f32.gmra.mrb[0].mxu0 %v642
    %v865 = vpop.f32.mrb[0].mxu0
    %v866 = vadd.f32 0.0, %v865
    %v867 = vpop.f32.mrb[0].mxu0
    %868 = vdwg.mxu0
    %v869 = vmax.f32 %v711, 0.0
    %v870 = vmax.f32 %v716, 0.0
    %v871 = vmax.f32 %v721, 0.0
    %v872 = vmax.f32 %v726, 0.0
    %v873 = vmax.f32 %v731, 0.0
    %v874 = vmax.f32 %v736, 0.0
    %v875 = vmax.f32 %v741, 0.0
    %v876 = vmax.f32 %v746, 0.0
    %v877 = vmax.f32 %v751, 0.0
    %v878 = vmax.f32 %v756, 0.0
    %v879 = vmax.f32 %v761, 0.0
    %v880 = vmax.f32 %v766, 0.0
    %v881 = vmax.f32 %v771, 0.0
    %v882 = vmax.f32 %v776, 0.0
    %v883 = vmax.f32 %v781, 0.0
    %v884 = vmax.f32 %v786, 0.0
    %v885 = vmax.f32 %v791, 0.0
    %v886 = vmax.f32 %v796, 0.0
    %v887 = vmax.f32 %v801, 0.0
    %v888 = vmax.f32 %v806, 0.0
    %v889 = vmax.f32 %v811, 0.0
    %v890 = vmax.f32 %v816, 0.0
    %v891 = vmax.f32 %v821, 0.0
    %v892 = vmax.f32 %v826, 0.0
    %v893 = vmax.f32 %v831, 0.0
    %v894 = vmax.f32 %v836, 0.0
    %v895 = vmax.f32 %v841, 0.0
    %v896 = vmax.f32 %v846, 0.0
    %v897 = vmax.f32 %v851, 0.0
    %v898 = vmax.f32 %v856, 0.0
    %v899 = vmax.f32 %v861, 0.0
    %v900 = vmax.f32 %v866, 0.0
    %v901 = vadd.f32 %v869, %v870
    %v902 = vadd.f32 %v901, %v871
    %v903 = vadd.f32 %v902, %v872
    %v904 = vadd.f32 %v903, %v873
    %v905 = vadd.f32 %v904, %v874
    %v906 = vadd.f32 %v905, %v875
    %v907 = vadd.f32 %v906, %v876
    %v908 = vadd.f32 %v907, %v877
    %v909 = vadd.f32 %v908, %v878
    %v910 = vadd.f32 %v909, %v879
    %v911 = vadd.f32 %v910, %v880
    %v912 = vadd.f32 %v911, %v881
    %v913 = vadd.f32 %v912, %v882
    %v914 = vadd.f32 %v913, %v883
    %v915 = vadd.f32 %v914, %v884
    %v916 = vadd.f32 %v915, %v885
    %v917 = vadd.f32 %v916, %v886
    %v918 = vadd.f32 %v917, %v887
    %v919 = vadd.f32 %v918, %v888
    %v920 = vadd.f32 %v919, %v889
    %v921 = vadd.f32 %v920, %v890
    %v922 = vadd.f32 %v921, %v891
    %v923 = vadd.f32 %v922, %v892
    %v924 = vadd.f32 %v923, %v893
    %v925 = vadd.f32 %v924, %v894
    %v926 = vadd.f32 %v925, %v895
    %v927 = vadd.f32 %v926, %v896
    %v928 = vadd.f32 %v927, %v897
    %v929 = vadd.f32 %v928, %v898
    %v930 = vadd.f32 %v929, %v899
    %v931 = vadd.f32 %v930, %v900
    %v932 = vrot.slane %v931, 4
    %v933 = vadd.f32 %v931, %v932
    %v934 = vrot.slane %v933, 2
    %v935 = vadd.f32 %v933, %v934
    %v936 = vrot.slane %v935, 1
    %v937 = vadd.f32 %v935, %v936
    %vm938 = vcmask 1040384
    %v939 = vsel %vm938, %v480, %v937
    %v940 = vmul.f32 %v939, 0.00390625
    %v941 = vld [vmem:[%s2] sm:$0xff]
    %v942 = vld [vmem:[%s2 + $0x8] sm:$0xff]
    %v943 = vld [vmem:[%s2 + $0x10] sm:$0xff]
    %v944 = vld [vmem:[%s2 + $0x18] sm:$0xff]
    %v945 = vld [vmem:[%s2 + $0x20] sm:$0xff]
    %v946 = vld [vmem:[%s2 + $0x28] sm:$0xff]
    %v947 = vld [vmem:[%s2 + $0x30] sm:$0xff]
    %v948 = vld [vmem:[%s2 + $0x38] sm:$0xff]
    %v949 = vld [vmem:[%s2 + $0x40] sm:$0xff]
    %v950 = vld [vmem:[%s2 + $0x48] sm:$0xff]
    %v951 = vld [vmem:[%s2 + $0x50] sm:$0xff]
    %v952 = vld [vmem:[%s2 + $0x58] sm:$0xff]
    %v953 = vld [vmem:[%s2 + $0x60] sm:$0xff]
    %v954 = vld [vmem:[%s2 + $0x68] sm:$0xff]
    %v955 = vld [vmem:[%s2 + $0x70] sm:$0xff]
    %v956 = vld [vmem:[%s2 + $0x78] sm:$0xff]
    %v957 = vlaneseq
    %v958 = vshrl.u32 %v957, 7
    %v959 = vsub.s32 0, %v958
    %v960 = vrot.slane %v19, %v959
    %961 = vmatprep.subr.mxu0 0.0
    %962 = vmatpush1.msra.mxu0 %v941
    %963 = vmatprep.subr.mxu0 0.0
    %964 = vmatpush1.msra.mxu0 %v942
    %965 = vmatprep.subr.mxu0 0.0
    %966 = vmatpush1.msra.mxu0 %v943
    %967 = vmatprep.subr.mxu0 0.0
    %968 = vmatpush1.msra.mxu0 %v944
    %969 = vmatprep.subr.mxu0 0.0
    %970 = vmatpush1.msra.mxu0 %v945
    %971 = vmatprep.subr.mxu0 0.0
    %972 = vmatpush1.msra.mxu0 %v946
    %973 = vmatprep.subr.mxu0 0.0
    %974 = vmatpush1.msra.mxu0 %v947
    %975 = vmatprep.subr.mxu0 0.0
    %976 = vmatpush1.msra.mxu0 %v948
    %977 = vmatprep.subr.mxu0 0.0
    %978 = vmatpush1.msra.mxu0 %v949
    %979 = vmatprep.subr.mxu0 0.0
    %980 = vmatpush1.msra.mxu0 %v950
    %981 = vmatprep.subr.mxu0 0.0
    %982 = vmatpush1.msra.mxu0 %v951
    %983 = vmatprep.subr.mxu0 0.0
    %984 = vmatpush1.msra.mxu0 %v952
    %985 = vmatprep.subr.mxu0 0.0
    %986 = vmatpush1.msra.mxu0 %v953
    %987 = vmatprep.subr.mxu0 0.0
    %988 = vmatpush1.msra.mxu0 %v954
    %989 = vmatprep.subr.mxu0 0.0
    %990 = vmatpush1.msra.mxu0 %v955
    %991 = vmatprep.subr.mxu0 0.0
    %992 = vmatpush1.msra.mxu0 %v956
    %993 = vmatprep.subr.mxu0 0.0
    %994 = vmatpush1.msra.mxu0 0.0
    %995 = vmatprep.subr.mxu0 0.0
    %996 = vmatpush1.msra.mxu0 0.0
    %997 = vmatprep.subr.mxu0 0.0
    %998 = vmatpush1.msra.mxu0 0.0
    %999 = vmatprep.subr.mxu0 0.0
    %1000 = vmatpush1.msra.mxu0 0.0
    %1001 = vmatprep.subr.mxu0 0.0
    %1002 = vmatpush1.msra.mxu0 0.0
    %1003 = vmatprep.subr.mxu0 0.0
    %1004 = vmatpush1.msra.mxu0 0.0
    %1005 = vmatprep.subr.mxu0 0.0
    %1006 = vmatpush1.msra.mxu0 0.0
    %1007 = vmatprep.subr.mxu0 0.0
    %1008 = vmatpush1.msra.mxu0 0.0
    %1009 = vmatprep.subr.mxu0 0.0
    %1010 = vmatpush1.msra.mxu0 0.0
    %1011 = vmatprep.subr.mxu0 0.0
    %1012 = vmatpush1.msra.mxu0 0.0
    %1013 = vmatprep.subr.mxu0 0.0
    %1014 = vmatpush1.msra.mxu0 0.0
    %1015 = vmatprep.subr.mxu0 0.0
    %1016 = vmatpush1.msra.mxu0 0.0
    %1017 = vmatprep.subr.mxu0 0.0
    %1018 = vmatpush1.msra.mxu0 0.0
    %1019 = vmatprep.subr.mxu0 0.0
    %1020 = vmatpush1.msra.mxu0 0.0
    %1021 = vmatprep.subr.mxu0 0.0
    %1022 = vmatpush1.msra.mxu0 0.0
    %1023 = vmatprep.subr.mxu0 0.0
    %1024 = vmatpush1.msra.mxu0 0.0
    %1025 = vmatprep.mubr.f32.mxu0 0.0
    %1026 = vmatmul.mubr.f32.gmra.mrb[0].mxu0 %v940
    %v1027 = vpop.f32.mrb[0].mxu0
    %v1028 = vadd.f32 %v960, %v1027
    %v1029 = vpop.f32.mrb[0].mxu0
    %1030 = vdwg.mxu0
    %vm1031 = vcmask 1041408
    %v1032 = vsel %vm1031, %v1028, 0.0
    %v1033 = vrot.slane %v1032, 4
    %v1034 = vadd.f32 %v1032, %v1033
    %v1035 = vrot.slane %v1034, 2
    %v1036 = vadd.f32 %v1034, %v1035
    %v1037 = vrot.slane %v1036, 1
    %v1038 = vadd.f32 %v1036, %v1037
    %v1039 = vrcp.pop 2.0
    %v1040 = vmul.f32 %v1038, %v1039
    %v1041 = vsub.f32 %v1028, %v1040
    %v1042 = vmul.f32 %v1041, %v1041
    %v1043 = vsel %vm1031, %v1042, 0.0
    %v1044 = vrot.slane %v1043, 4
    %v1045 = vadd.f32 %v1043, %v1044
    %v1046 = vrot.slane %v1045, 2
    %v1047 = vadd.f32 %v1045, %v1046
    %v1048 = vrot.slane %v1047, 1
    %v1049 = vadd.f32 %v1047, %v1048
    %v1050 = vmul.f32 %v1049, %v1039
    %v1051 = vadd.f32 %v1050, 1e-05
    %v1052 = vrsqrt.pop %v1051
    %v1053 = vmul.f32 %v19, %v1052
    %v1054 = vlaneseq
    %v1055 = vshrl.u32 %v1054, 7
    %v1056 = vsub.s32 1, %v1055
    %v1057 = vrot.slane %v1053, %v1056
    %v1058 = vmul.f32 %v1041, %v1057
    %v1059 = vlaneseq
    %v1060 = vshrl.u32 %v1059, 7
    %v1061 = vsub.s32 2, %v1060
    %v1062 = vrot.slane %v19, %v1061
    %v1063 = vadd.f32 %v1058, %v1062
    %1064 = vst [vmem:[#allocation2] sm:$0x3] %v1063
    // Predicated region
    $region18: #{encoder_cnn_forward.1} parent=1 // pred_check
      _
    $region19: #{encoder_cnn_forward.1} parent=1 // pred_check_branch
      %1066 = sbr.rel (0) target = $region21
    $region20: #{encoder_cnn_forward.1} parent=1 // pred_region
      %s1068 = ssub.s32 32, 32
      %1069 = vsyncadd [#allocation3], %s1068
      %s1071 = sshll.u32 [#allocation2], 4
      %s1072 = int_to_ptr.vmem [resolvable:$true] %s1071
      %1074 = dma.vmem_to_hbm [thread:$0]  %s1072, 32, %s4, [#allocation3]
    $region21: #{encoder_cnn_forward.1} parent=1 // pred_fallthru
      _
    // Predicated region
    $region22: #{encoder_cnn_forward.1} parent=1 // pred_check
      _
    $region23: #{encoder_cnn_forward.1} parent=1 // pred_check_branch
      %1076 = sbr.rel (0) target = $region25
    $region24: #{encoder_cnn_forward.1} parent=1 // pred_region
      %1077 = dma.done [#allocation3], 32
    $region25: #{encoder_cnn_forward.1} parent=1 // pred_fallthru
      _
    %1078 = vsyncpa [#allocation3], 1

</llo_original>
